<compile_context>
chip_gen: v6e
topology: v6e:2x2x1
jax: 0.10.0
libtpu: 0.0.40
codegen_flags: <defaults>
</compile_context>

<pallas_src>
import functools

import jax
import jax.numpy as jnp
from jax.experimental import pallas as pl
from jax.experimental.pallas import tpu as pltpu

LANE = 128


def _round_up(x, m):
    return ((x + m - 1) // m) * m


def mlp_kernel(x_ref, w1_ref, b1_ref, w2_ref, b2_ref, o_ref):
    # fc1: [TB, D_in] @ [D_in, H] -> f32 accumulation on the MXU.
    x = x_ref[...].astype(jnp.bfloat16)          # in-kernel cast (no extra HBM pass)
    h = jnp.dot(x, w1_ref[...], preferred_element_type=jnp.float32)
    h = jnp.maximum(h + b1_ref[...], 0.0)        # bias + ReLU in f32
    # fc2: cast activation to bf16 for the MXU, accumulate in f32.
    out = jnp.dot(h.astype(jnp.bfloat16), w2_ref[...],
                  preferred_element_type=jnp.float32)
    o_ref[...] = (out + b2_ref[...]).astype(o_ref.dtype)   # bf16 writeback


@functools.partial(jax.jit, static_argnames=("num_classes", "block_b"))
def nn_forward(x, w1, b1, w2, b2, *, num_classes, block_b=512):
    """x: [B, D_in] f32; w1/w2: bf16 padded; b1/b2: f32 padded (lane-dense)."""
    B, d_in = x.shape
    H = w1.shape[1]        # padded hidden (multiple of 128)
    C_pad = w2.shape[1]    # padded classes (multiple of 128)

    # Batch tile: multiple of 8 sublanes, <= block_b, and <= ceil(B/2) so the
    # grid has >=2 steps (keeps both v7x TensorCores busy).  Partial last block
    # is masked by Pallas; padded output rows are sliced away below.
    tb = max(8, min(block_b, _round_up(pl.cdiv(B, 2), 8)))
    grid_b = pl.cdiv(B, tb)

    cost = pl.CostEstimate(
        flops=2 * B * (d_in * H + H * C_pad),
        transcendentals=0,
        bytes_accessed=(B * d_in * 4            # x read (f32)
                        + d_in * H * 2 + H * C_pad * 2   # bf16 weights
                        + (H + C_pad) * 4       # f32 biases
                        + B * C_pad * 2),       # bf16 output write
    )

    out = pl.pallas_call(
        mlp_kernel,
        out_shape=jax.ShapeDtypeStruct((B, C_pad), jnp.bfloat16),
        grid=(grid_b,),
        in_specs=[
            pl.BlockSpec((tb, d_in), lambda i: (i, 0)),     # x tile, streamed
            pl.BlockSpec((d_in, H), lambda i: (0, 0)),      # w1, resident
            pl.BlockSpec((1, H), lambda i: (0, 0)),         # b1, resident
            pl.BlockSpec((H, C_pad), lambda i: (0, 0)),     # w2, resident
            pl.BlockSpec((1, C_pad), lambda i: (0, 0)),     # b2, resident
        ],
        out_specs=pl.BlockSpec((tb, C_pad), lambda i: (i, 0)),
        compiler_params=pltpu.CompilerParams(
            dimension_semantics=("parallel",),
        ),
        cost_estimate=cost,
    )(x, w1, b1, w2, b2)

    # Only the first num_classes lanes / first B rows are real logits.
    return out[:B, :num_classes]


def init_params(key, input_size, hidden, num_classes, dtype=jnp.float32):
    # PyTorch nn.Linear default init: U(-1/sqrt(fan_in), 1/sqrt(fan_in)).
    k1, k2, k3, k4 = jax.random.split(key, 4)
    bound1 = 1.0 / (input_size ** 0.5)
    bound2 = 1.0 / (hidden ** 0.5)
    w1 = jax.random.uniform(k1, (input_size, hidden), dtype, -bound1, bound1)
    b1 = jax.random.uniform(k2, (1, hidden), dtype, -bound1, bound1)
    w2 = jax.random.uniform(k3, (hidden, num_classes), dtype, -bound2, bound2)
    b2 = jax.random.uniform(k4, (1, num_classes), dtype, -bound2, bound2)
    return w1, b1, w2, b2


def pad_and_cast_params(w1, b1, w2, b2):
    """Zero-pad hidden/class dims to 128 lanes; weights bf16, biases f32."""
    d_in, hidden = w1.shape
    num_classes = w2.shape[1]
    h_pad = _round_up(hidden, LANE)
    c_pad = _round_up(num_classes, LANE)

    w1p = jnp.zeros((d_in, h_pad), jnp.bfloat16).at[:, :hidden].set(
        w1.astype(jnp.bfloat16))
    b1p = jnp.zeros((1, h_pad), jnp.float32).at[:, :hidden].set(b1)
    w2p = jnp.zeros((h_pad, c_pad), jnp.bfloat16).at[:hidden, :num_classes].set(
        w2.astype(jnp.bfloat16))
    b2p = jnp.zeros((1, c_pad), jnp.float32).at[:, :num_classes].set(b2)
    return w1p, b1p, w2p, b2p


if __name__ == "__main__":
    input_size = 784
    hidden = 50
    num_classes = 10
    batch = 64

    key = jax.random.PRNGKey(0)
    kx, kp = jax.random.split(key)
    x = jax.random.normal(kx, (batch, input_size), jnp.float32)
    w1, b1, w2, b2 = init_params(kp, input_size, hidden, num_classes)
    w1p, b1p, w2p, b2p = pad_and_cast_params(w1, b1, w2, b2)

    out = nn_forward(x, w1p, b1p, w2p, b2p, num_classes=num_classes)
    out = jax.block_until_ready(out)

    # Reference with matching bf16-input / f32-accumulation numerics.
    xb = x.astype(jnp.bfloat16).astype(jnp.float32)
    w1b = w1.astype(jnp.bfloat16).astype(jnp.float32)
    w2b = w2.astype(jnp.bfloat16).astype(jnp.float32)
    h_ref = jnp.maximum(xb @ w1b + b1, 0.0)
    ref = h_ref.astype(jnp.bfloat16).astype(jnp.float32) @ w2b + b2

    assert out.shape == (batch, num_classes)
    assert jnp.allclose(out.astype(jnp.float32), ref, atol=2e-2, rtol=2e-2)

    print("KERNEL_OK")
</pallas_src>

<mosaic_0001>
module attributes {stable_mosaic.version = 11 : i64} {
  func.func @mlp_kernel(%arg0: i32, %arg1: memref<32x784xf32, #tpu.memory_space<vmem>>, %arg2: memref<784x128xbf16, #tpu.memory_space<vmem>>, %arg3: memref<1x128xf32, #tpu.memory_space<vmem>>, %arg4: memref<128x128xbf16, #tpu.memory_space<vmem>>, %arg5: memref<1x128xf32, #tpu.memory_space<vmem>>, %arg6: memref<32x128xbf16, #tpu.memory_space<vmem>>) attributes {dimension_semantics = [#tpu.dimension_semantics<parallel>], iteration_bounds = array<i64: 2>, scalar_prefetch = 0 : i64, scratch_operands = 0 : i64, tpu.core_type = #tpu.core_type<tc>, window_params = [{transform_indices = @transform_0, window_bounds = array<i64: 32, 784>}, {pipeline_mode = #tpu.pipeline_mode<synchronous>, transform_indices = @transform_1, window_bounds = array<i64: 784, 128>}, {pipeline_mode = #tpu.pipeline_mode<synchronous>, transform_indices = @transform_2, window_bounds = array<i64: 1, 128>}, {pipeline_mode = #tpu.pipeline_mode<synchronous>, transform_indices = @transform_3, window_bounds = array<i64: 128, 128>}, {pipeline_mode = #tpu.pipeline_mode<synchronous>, transform_indices = @transform_4, window_bounds = array<i64: 1, 128>}, {transform_indices = @transform_5, window_bounds = array<i64: 32, 128>}]} {
    %c0 = arith.constant 0 : index
    %c0_0 = arith.constant 0 : index
    %0 = vector.load %arg1[%c0, %c0_0] : memref<32x784xf32, #tpu.memory_space<vmem>>, vector<32x784xf32>
    %1 = arith.truncf %0 : vector<32x784xf32> to vector<32x784xbf16>
    %c0_1 = arith.constant 0 : index
    %c0_2 = arith.constant 0 : index
    %2 = vector.load %arg2[%c0_1, %c0_2] : memref<784x128xbf16, #tpu.memory_space<vmem>>, vector<784x128xbf16>
    %cst = arith.constant dense<0.000000e+00> : vector<32x128xf32>
    %3 = tpu.matmul %1, %2, %cst {dimension_numbers = #tpu.dot_dimension_numbers<[1], [0], [0], [1], [0, 0, 1, 1], [], []>} : vector<32x784xbf16>, vector<784x128xbf16>, vector<32x128xf32> -> vector<32x128xf32>
    %c0_3 = arith.constant 0 : index
    %c0_4 = arith.constant 0 : index
    %4 = vector.load %arg3[%c0_3, %c0_4] : memref<1x128xf32, #tpu.memory_space<vmem>>, vector<1x128xf32>
    %5 = vector.broadcast %4 : vector<1x128xf32> to vector<32x128xf32>
    %6 = arith.addf %3, %5 : vector<32x128xf32>
    %cst_5 = arith.constant 0.000000e+00 : f32
    %7 = vector.broadcast %cst_5 : f32 to vector<32x128xf32>
    %8 = arith.maximumf %6, %7 : vector<32x128xf32>
    %9 = arith.truncf %8 : vector<32x128xf32> to vector<32x128xbf16>
    %c0_6 = arith.constant 0 : index
    %c0_7 = arith.constant 0 : index
    %10 = vector.load %arg4[%c0_6, %c0_7] : memref<128x128xbf16, #tpu.memory_space<vmem>>, vector<128x128xbf16>
    %cst_8 = arith.constant dense<0.000000e+00> : vector<32x128xf32>
    %11 = tpu.matmul %9, %10, %cst_8 {dimension_numbers = #tpu.dot_dimension_numbers<[1], [0], [0], [1], [0, 0, 1, 1], [], []>} : vector<32x128xbf16>, vector<128x128xbf16>, vector<32x128xf32> -> vector<32x128xf32>
    %c0_9 = arith.constant 0 : index
    %c0_10 = arith.constant 0 : index
    %12 = vector.load %arg5[%c0_9, %c0_10] : memref<1x128xf32, #tpu.memory_space<vmem>>, vector<1x128xf32>
    %13 = vector.broadcast %12 : vector<1x128xf32> to vector<32x128xf32>
    %14 = arith.addf %11, %13 : vector<32x128xf32>
    %15 = arith.truncf %14 : vector<32x128xf32> to vector<32x128xbf16>
    %c0_11 = arith.constant 0 : index
    %c0_12 = arith.constant 0 : index
    %16 = vector.load %arg6[%c0_11, %c0_12] : memref<32x128xbf16, #tpu.memory_space<vmem>>, vector<32x128xbf16>
    tpu.vector_store %arg6[%c0_11, %c0_12], %15 {strides = array<i32>} : memref<32x128xbf16, #tpu.memory_space<vmem>>, vector<32x128xbf16>,
    return
  }
  func.func @transform_0(%arg0: i32) -> (i32, i32) {
    %c0_i32 = arith.constant 0 : i32
    %c0_i32_0 = arith.constant 0 : i32
    return %arg0, %c0_i32 : i32, i32
  }
  func.func @transform_1(%arg0: i32) -> (i32, i32) {
    %c0_i32 = arith.constant 0 : i32
    %c0_i32_0 = arith.constant 0 : i32
    %c0_i32_1 = arith.constant 0 : i32
    return %c0_i32, %c0_i32_0 : i32, i32
  }
  func.func @transform_2(%arg0: i32) -> (i32, i32) {
    %c0_i32 = arith.constant 0 : i32
    %c0_i32_0 = arith.constant 0 : i32
    %c0_i32_1 = arith.constant 0 : i32
    return %c0_i32, %c0_i32_0 : i32, i32
  }
  func.func @transform_3(%arg0: i32) -> (i32, i32) {
    %c0_i32 = arith.constant 0 : i32
    %c0_i32_0 = arith.constant 0 : i32
    %c0_i32_1 = arith.constant 0 : i32
    return %c0_i32, %c0_i32_0 : i32, i32
  }
  func.func @transform_4(%arg0: i32) -> (i32, i32) {
    %c0_i32 = arith.constant 0 : i32
    %c0_i32_0 = arith.constant 0 : i32
    %c0_i32_1 = arith.constant 0 : i32
    return %c0_i32, %c0_i32_0 : i32, i32
  }
  func.func @transform_5(%arg0: i32) -> (i32, i32) {
    %c0_i32 = arith.constant 0 : i32
    %c0_i32_0 = arith.constant 0 : i32
    return %arg0, %c0_i32 : i32, i32
  }
}

</mosaic_0001>

<llo_original>
// kernel: nn_forward.1
$region0: #{nn_forward.1}
  #allocation0 [shape = 'u32[]', space=smem, size = 0x4, offset = 0x4, fixed_abs, tag = 'smem constant byte address 0x4 - core index']
  #allocation1 [shape = 'u32[144,128]{1,0:T(1,128)}', space=vmem, size = 0x12000, scoped, tag = 'internal scratch']
  %s0 = inlined_call_operand.hbm [shape: f32[64,784], index: 0, kind: input, shape index: {}]
  %s1 = inlined_call_operand.hbm [shape: bf16[784,128], index: 1, kind: input, shape index: {}]
  %s2 = inlined_call_operand.vmem [shape: f32[1,128], index: 2, kind: input, shape index: {}]
  %s3 = inlined_call_operand.hbm [shape: bf16[128,128], index: 3, kind: input, shape index: {}]
  %s4 = inlined_call_operand.vmem [shape: f32[1,128], index: 4, kind: input, shape index: {}]
  %s5 = inlined_call_operand.vmem [shape: bf16[64,128], index: 5, kind: output, shape index: {}]
  %s6 = sld [smem:[#allocation0]]
  $region65: #{nn_forward.1} parent=0
    _
  %s8 = ssub.s32 1, %s6
  %s9 = scalar_select 0, %s8, %s6
  $region1: #{nn_forward.1} parent=0
    #allocation2 [shape = 'u8[229376]{0}', space=vmem, size = 0x38000, scoped, tag = 'input window, operand 0']
    #allocation3 [shape = 's32[2]{0}', space=sflag, size = 0x8, scoped, tag = 'scoped memory for nn_forward.1']
    #allocation4 [shape = 'u8[200704]{0}', space=vmem, size = 0x31000, scoped, tag = 'input window, operand 1, single buffered']
    #allocation5 [shape = 's32[1]{0}', space=sflag, size = 0x4, scoped, tag = 'scoped memory for nn_forward.1']
    #allocation6 [shape = 'u8[32768]{0}', space=vmem, size = 0x8000, scoped, tag = 'input window, operand 3, single buffered']
    %10 = vsyncpa [#allocation3], 0
    %s11 = scalar_lea.sflag [#allocation3], 1
    %12 = vsyncpa %s11, 0
    %13 = vsyncpa [#allocation5], 0
    loop: start=0, step=1, limit=4
    $region2: #{nn_forward.1} parent=1 // loop_pre_header
      _
    $region3: #{nn_forward.1} parent=1 // loop_header
      %s15 = sphi 0, %s19
      %p16 = scmp.ge.s32.totalorder %s15, 4
      %s25 = sphi 0, %s27
      %s28 = sphi 0, %s25
      %s29 = sphi 0, %s28
      %s45 = sphi 0, %s29
      %s49 = sphi 0, %s49
      %s51 = sphi 0, %s49
      %s52 = sphi 0, %s51
      %s66 = sphi 0, %s52
      %s70 = sphi 0, %s70
      %s72 = sphi 0, %s70
      %s73 = sphi 0, %s72
      %s87 = sphi 0, %s73
      %s91 = sphi 0, %s91
      %s93 = sphi 0, %s91
      %s94 = sphi 0, %s93
      %s108 = sphi 0, %s94
      %s112 = sphi 0, %s112
      %s114 = sphi 0, %s112
      %s115 = sphi 0, %s114
      %s129 = sphi 0, %s115
      %s135 = sphi 0, %s137
      %s138 = sphi 0, %s135
      %s139 = sphi 0, %s138
      %s155 = sphi 0, %s139
    $region4: #{nn_forward.1} parent=1 // loop_header_branch
      %18 = sbr.rel (%p16) target = $region8
    $region5: #{nn_forward.1} parent=1 // loop_body
      %s20 = ssub.s32 %s15, 1
      %s21 = ssub.s32 %s15, 2
      %s22 = sadd.s32 %s15, 1
      %s23 = ssub.s32 %s15, %s22
      %p24 = scmp.eq.s32.totalorder %s23, 0
      %s26 = sadd.s32 %s25, 1
      %s27 = scalar_select %p24, %s25, %s26
      %p30 = pneg %p24
      %p31 = scmp.eq.s32.totalorder %s15, 1
      %p32 = por %p30, %p31
      %p33 = scmp.ne.s32.totalorder %s25, %s28
      %p34 = scmp.eq.s32.totalorder %s15, 0
      %p35 = por %p33, %p34
      %p36 = scmp.ne.s32.totalorder %s25, %s28
      %p37 = scmp.eq.s32.totalorder %s20, 1
      %p38 = por %p36, %p37
      %p39 = scmp.ne.s32.totalorder %s28, %s29
      %p40 = scmp.eq.s32.totalorder %s20, 0
      %p41 = por %p39, %p40
      %p42 = scmp.ne.s32.totalorder %s28, %s29
      %p43 = scmp.eq.s32.totalorder %s21, 1
      %p44 = por %p42, %p43
      %p46 = scmp.ne.s32.totalorder %s29, %s45
      %p47 = scmp.eq.s32.totalorder %s21, 0
      %p48 = por %p46, %p47
      %s50 = sadd.s32 %s49, 1
      %p53 = scmp.eq.s32.totalorder %s15, 1
      %p54 = scmp.ne.s32.totalorder %s49, %s51
      %p55 = scmp.eq.s32.totalorder %s15, 0
      %p56 = por %p54, %p55
      %p57 = scmp.ne.s32.totalorder %s49, %s51
      %p58 = scmp.eq.s32.totalorder %s20, 1
      %p59 = por %p57, %p58
      %p60 = scmp.ne.s32.totalorder %s51, %s52
      %p61 = scmp.eq.s32.totalorder %s20, 0
      %p62 = por %p60, %p61
      %p63 = scmp.ne.s32.totalorder %s51, %s52
      %p64 = scmp.eq.s32.totalorder %s21, 1
      %p65 = por %p63, %p64
      %p67 = scmp.ne.s32.totalorder %s52, %s66
      %p68 = scmp.eq.s32.totalorder %s21, 0
      %p69 = por %p67, %p68
      %s71 = sadd.s32 %s70, 1
      %p74 = scmp.eq.s32.totalorder %s15, 1
      %p75 = scmp.ne.s32.totalorder %s70, %s72
      %p76 = scmp.eq.s32.totalorder %s15, 0
      %p77 = por %p75, %p76
      %p78 = scmp.ne.s32.totalorder %s70, %s72
      %p79 = scmp.eq.s32.totalorder %s20, 1
      %p80 = por %p78, %p79
      %p81 = scmp.ne.s32.totalorder %s72, %s73
      %p82 = scmp.eq.s32.totalorder %s20, 0
      %p83 = por %p81, %p82
      %p84 = scmp.ne.s32.totalorder %s72, %s73
      %p85 = scmp.eq.s32.totalorder %s21, 1
      %p86 = por %p84, %p85
      %p88 = scmp.ne.s32.totalorder %s73, %s87
      %p89 = scmp.eq.s32.totalorder %s21, 0
      %p90 = por %p88, %p89
      %s92 = sadd.s32 %s91, 1
      %p95 = scmp.eq.s32.totalorder %s15, 1
      %p96 = scmp.ne.s32.totalorder %s91, %s93
      %p97 = scmp.eq.s32.totalorder %s15, 0
      %p98 = por %p96, %p97
      %p99 = scmp.ne.s32.totalorder %s91, %s93
      %p100 = scmp.eq.s32.totalorder %s20, 1
      %p101 = por %p99, %p100
      %p102 = scmp.ne.s32.totalorder %s93, %s94
      %p103 = scmp.eq.s32.totalorder %s20, 0
      %p104 = por %p102, %p103
      %p105 = scmp.ne.s32.totalorder %s93, %s94
      %p106 = scmp.eq.s32.totalorder %s21, 1
      %p107 = por %p105, %p106
      %p109 = scmp.ne.s32.totalorder %s94, %s108
      %p110 = scmp.eq.s32.totalorder %s21, 0
      %p111 = por %p109, %p110
      %s113 = sadd.s32 %s112, 1
      %p116 = scmp.eq.s32.totalorder %s15, 1
      %p117 = scmp.ne.s32.totalorder %s112, %s114
      %p118 = scmp.eq.s32.totalorder %s15, 0
      %p119 = por %p117, %p118
      %p120 = scmp.ne.s32.totalorder %s112, %s114
      %p121 = scmp.eq.s32.totalorder %s20, 1
      %p122 = por %p120, %p121
      %p123 = scmp.ne.s32.totalorder %s114, %s115
      %p124 = scmp.eq.s32.totalorder %s20, 0
      %p125 = por %p123, %p124
      %p126 = scmp.ne.s32.totalorder %s114, %s115
      %p127 = scmp.eq.s32.totalorder %s21, 1
      %p128 = por %p126, %p127
      %p130 = scmp.ne.s32.totalorder %s115, %s129
      %p131 = scmp.eq.s32.totalorder %s21, 0
      %p132 = por %p130, %p131
      %s133 = ssub.s32 %s15, %s22
      %p134 = scmp.eq.s32.totalorder %s133, 0
      %s136 = sadd.s32 %s135, 1
      %s137 = scalar_select %p134, %s135, %s136
      %p140 = pneg %p134
      %p141 = scmp.eq.s32.totalorder %s15, 1
      %p142 = por %p140, %p141
      %p143 = scmp.ne.s32.totalorder %s135, %s138
      %p144 = scmp.eq.s32.totalorder %s15, 0
      %p145 = por %p143, %p144
      %p146 = scmp.ne.s32.totalorder %s135, %s138
      %p147 = scmp.eq.s32.totalorder %s20, 1
      %p148 = por %p146, %p147
      %p149 = scmp.ne.s32.totalorder %s138, %s139
      %p150 = scmp.eq.s32.totalorder %s20, 0
      %p151 = por %p149, %p150
      %p152 = scmp.ne.s32.totalorder %s138, %s139
      %p153 = scmp.eq.s32.totalorder %s21, 1
      %p154 = por %p152, %p153
      %p156 = scmp.ne.s32.totalorder %s139, %s155
      %p157 = scmp.eq.s32.totalorder %s21, 0
      %p158 = por %p156, %p157
      %p159 = scmp.le.s32.totalorder 1, %s15
      %p160 = scmp.lt.s32.totalorder %s15, 3
      %p161 = pnand %p159, %p160
      %p162 = pneg %p161
      // Predicated region
      $region9: #{nn_forward.1} parent=5 // pred_check
        _
      $region10: #{nn_forward.1} parent=5 // pred_check_branch
        %164 = sbr.rel (%p161) target = $region12
      $region11: #{nn_forward.1} parent=5 // pred_region
        %s165 = ssub.s32 %s15, 1
        // Predicated region
        $region13: #{nn_forward.1} parent=11 // pred_check
          %p166 = pneg %p62
        $region14: #{nn_forward.1} parent=11 // pred_check_branch
          %168 = sbr.rel (%p166) target = $region16
        $region15: #{nn_forward.1} parent=11 // pred_region
          %s170 = ssub.s32 6272, 6272
          %171 = vsyncadd [#allocation5], %s170
          %s172 = sshll.u32 [#allocation4], 4
          %s173 = int_to_ptr.vmem [resolvable:$true] %s172
          %178 = dma.hbm_to_vmem [thread:$0]  %s1, 6272, %s173, [#allocation5], 64, 64, 4
        $region16: #{nn_forward.1} parent=11 // pred_fallthru
          _
        // Predicated region
        $region17: #{nn_forward.1} parent=11 // pred_check
          %p179 = pneg %p83
        $region18: #{nn_forward.1} parent=11 // pred_check_branch
          %181 = sbr.rel (%p179) target = $region20
        $region19: #{nn_forward.1} parent=11 // pred_region
          _
        $region20: #{nn_forward.1} parent=11 // pred_fallthru
          _
        // Predicated region
        $region21: #{nn_forward.1} parent=11 // pred_check
          %p182 = pneg %p104
        $region22: #{nn_forward.1} parent=11 // pred_check_branch
          %184 = sbr.rel (%p182) target = $region24
        $region23: #{nn_forward.1} parent=11 // pred_region
          %s186 = ssub.s32 1024, 1024
          %187 = vsyncadd [#allocation5], %s186
          %s188 = sshll.u32 [#allocation6], 4
          %s189 = int_to_ptr.vmem [resolvable:$true] %s188
          %194 = dma.hbm_to_vmem [thread:$0]  %s3, 1024, %s189, [#allocation5], 64, 64, 4
        $region24: #{nn_forward.1} parent=11 // pred_fallthru
          _
        // Predicated region
        $region25: #{nn_forward.1} parent=11 // pred_check
          %p195 = pneg %p125
        $region26: #{nn_forward.1} parent=11 // pred_check_branch
          %197 = sbr.rel (%p195) target = $region28
        $region27: #{nn_forward.1} parent=11 // pred_region
          _
        $region28: #{nn_forward.1} parent=11 // pred_fallthru
          _
      $region12: #{nn_forward.1} parent=5 // pred_fallthru
        _
      %p198 = scmp.lt.s32.totalorder %s15, 2
      // Predicated region
      $region29: #{nn_forward.1} parent=5 // pred_check
        %p199 = pneg %p198
      $region30: #{nn_forward.1} parent=5 // pred_check_branch
        %201 = sbr.rel (%p199) target = $region32
      $region31: #{nn_forward.1} parent=5 // pred_region
        // Predicated region
        $region33: #{nn_forward.1} parent=31 // pred_check
          %p202 = pneg %p35
        $region34: #{nn_forward.1} parent=31 // pred_check_branch
          %204 = sbr.rel (%p202) target = $region36
        $region35: #{nn_forward.1} parent=31 // pred_region
          %s205 = sand.u32 %s25, 1
          %s206 = scalar_lea.sflag [#allocation3], %s205
          %s207 = sand.u32 %s25, 1
          %s208 = smul.addr %s207, 224
          %s209 = scalar_lea.vmem [#allocation2], %s208
          %s210 = smul.u32 4, %s15
          %s212 = ssub.s32 3584, 3584
          %213 = vsyncadd %s206, %s212
          %s214 = smul.addr %s210, 7
          %s215 = smul.addr %s214, 128
          %s216 = scalar_lea.hbm %s0, %s215
          %s217 = sshll.u32 %s209, 4
          %s218 = int_to_ptr.vmem [resolvable:$true] %s217
          %223 = dma.hbm_to_vmem [thread:$0]  %s216, 3584, %s218, %s206, 896, 896, 56
        $region36: #{nn_forward.1} parent=31 // pred_fallthru
          _
      $region32: #{nn_forward.1} parent=5 // pred_fallthru
        _
      %p224 = scmp.le.s32.totalorder 1, %s15
      %p225 = scmp.lt.s32.totalorder %s15, 3
      %p226 = pnand %p224, %p225
      %p227 = pneg %p226
      // Predicated region
      $region37: #{nn_forward.1} parent=5 // pred_check
        _
      $region38: #{nn_forward.1} parent=5 // pred_check_branch
        %229 = sbr.rel (%p226) target = $region40
      $region39: #{nn_forward.1} parent=5 // pred_region
        %s230 = ssub.s32 %s15, 1
        %s231 = sand.u32 %s28, 1
        %s232 = scalar_lea.sflag [#allocation3], %s231
        %s233 = sand.u32 %s28, 1
        %s234 = smul.addr %s233, 224
        %s235 = scalar_lea.vmem [#allocation2], %s234
        // Predicated region
        $region41: #{nn_forward.1} parent=39 // pred_check
          %p236 = pneg %p41
        $region42: #{nn_forward.1} parent=39 // pred_check_branch
          %238 = sbr.rel (%p236) target = $region44
        $region43: #{nn_forward.1} parent=39 // pred_region
          %239 = dma.done %s232, 3584
        $region44: #{nn_forward.1} parent=39 // pred_fallthru
          _
        // Predicated region
        $region45: #{nn_forward.1} parent=39 // pred_check
          %p240 = pneg %p62
        $region46: #{nn_forward.1} parent=39 // pred_check_branch
          %242 = sbr.rel (%p240) target = $region48
        $region47: #{nn_forward.1} parent=39 // pred_region
          %243 = dma.done [#allocation5], 6272
        $region48: #{nn_forward.1} parent=39 // pred_fallthru
          _
        // Predicated region
        $region49: #{nn_forward.1} parent=39 // pred_check
          %p244 = pneg %p104
        $region50: #{nn_forward.1} parent=39 // pred_check_branch
          %246 = sbr.rel (%p244) target = $region52
        $region51: #{nn_forward.1} parent=39 // pred_region
          %247 = dma.done [#allocation5], 1024
        $region52: #{nn_forward.1} parent=39 // pred_fallthru
          _
        %s248 = sand.u32 %s28, 1
        %s249 = scalar_lea.sflag [#allocation3], %s248
        %s250 = sand.u32 %s28, 1
        %s251 = smul.addr %s250, 224
        %s252 = scalar_lea.vmem [#allocation2], %s251
        %p253 = pneg %p41
        %p254 = pneg %p38
        %p255 = pneg %p62
        %p256 = pneg %p59
        %p257 = pneg %p83
        %p258 = pneg %p80
        %p259 = pneg %p104
        %p260 = pneg %p101
        %p261 = pneg %p125
        %p262 = pneg %p122
        %p263 = pneg %p151
        %p264 = pneg %p148
        %s265 = smul.u32 4, %s20
        %p266 = scmp.lt.s32.totalorder %s265, 7
        %s267 = scalar_select %p266, %s265, 7
        %s268 = smul.addr %s267, 4
        %s269 = scalar_lea.vmem %s5, %s268
        %s270 = smul.u32 4, %s20
        %s271 = smul.u32 4, %s20
        %p272 = scmp.lt.s32.totalorder %s271, 7
        %s273 = scalar_select %p272, %s271, 7
        %s274 = smul.addr %s273, 4
        %s275 = scalar_lea.vmem %s5, %s274
        %s276 = smul.u32 4, %s20
        %v278 = vld [vmem:[%s235] sm:$0xff]
        %v279 = vld [vmem:[%s235 + $0x8] sm:$0xff]
        %v280 = vld [vmem:[%s235 + $0x10] sm:$0xff]
        %v281 = vld [vmem:[%s235 + $0x18] sm:$0xff]
        %v282 = vld [vmem:[%s235 + $0x20] sm:$0xff]
        %v283 = vld [vmem:[%s235 + $0x28] sm:$0xff]
        %v284 = vld [vmem:[%s235 + $0x30] sm:$0xff]
        %v285 = vld [vmem:[%s235 + $0x38] sm:$0xff]
        %v286 = vld [vmem:[%s235 + $0x40] sm:$0xff]
        %v287 = vld [vmem:[%s235 + $0x48] sm:$0xff]
        %v288 = vld [vmem:[%s235 + $0x50] sm:$0xff]
        %v289 = vld [vmem:[%s235 + $0x58] sm:$0xff]
        %v290 = vld [vmem:[%s235 + $0x60] sm:$0xff]
        %v291 = vld [vmem:[%s235 + $0x68] sm:$0xff]
        %v292 = vld [vmem:[%s235 + $0x70] sm:$0xff]
        %v293 = vld [vmem:[%s235 + $0x78] sm:$0xff]
        %v294 = vld [vmem:[%s235 + $0x80] sm:$0xff]
        %v295 = vld [vmem:[%s235 + $0x88] sm:$0xff]
        %v296 = vld [vmem:[%s235 + $0x90] sm:$0xff]
        %v297 = vld [vmem:[%s235 + $0x98] sm:$0xff]
        %v298 = vld [vmem:[%s235 + $0xa0] sm:$0xff]
        %v299 = vld [vmem:[%s235 + $0xa8] sm:$0xff]
        %v300 = vld [vmem:[%s235 + $0xb0] sm:$0xff]
        %v301 = vld [vmem:[%s235 + $0xb8] sm:$0xff]
        %v302 = vld [vmem:[%s235 + $0xc0] sm:$0xff]
        %v303 = vld [vmem:[%s235 + $0xc8] sm:$0xff]
        %v304 = vld [vmem:[%s235 + $0xd0] sm:$0xff]
        %v305 = vld [vmem:[%s235 + $0xd8] sm:$0xff]
        %v306 = vpack.c.bf16 %v285, %v278
        %v307 = vpack.c.bf16 %v286, %v279
        %v308 = vpack.c.bf16 %v287, %v280
        %v309 = vpack.c.bf16 %v288, %v281
        %v310 = vpack.c.bf16 %v289, %v282
        %v311 = vpack.c.bf16 %v290, %v283
        %v312 = vpack.c.bf16 %v291, %v284
        %v313 = vpack.c.bf16 %v299, %v292
        %v314 = vpack.c.bf16 %v300, %v293
        %v315 = vpack.c.bf16 %v301, %v294
        %v316 = vpack.c.bf16 %v302, %v295
        %v317 = vpack.c.bf16 %v303, %v296
        %v318 = vpack.c.bf16 %v304, %v297
        %v319 = vpack.c.bf16 %v305, %v298
        %v320 = vld [vmem:[#allocation4] sm:$0xf]
        %v321 = vld [vmem:[#allocation4 + $0x4] sm:$0xf]
        %v322 = vld [vmem:[#allocation4 + $0x8] sm:$0xf]
        %v323 = vld [vmem:[#allocation4 + $0xc] sm:$0xf]
        %v324 = vld [vmem:[#allocation4 + $0x10] sm:$0xf]
        %v325 = vld [vmem:[#allocation4 + $0x14] sm:$0xf]
        %v326 = vld [vmem:[#allocation4 + $0x18] sm:$0xf]
        %v327 = vld [vmem:[#allocation4 + $0x1c] sm:$0xf]
        %v328 = vld [vmem:[#allocation4 + $0x20] sm:$0xf]
        %v329 = vld [vmem:[#allocation4 + $0x24] sm:$0xf]
        %v330 = vld [vmem:[#allocation4 + $0x28] sm:$0xf]
        %v331 = vld [vmem:[#allocation4 + $0x2c] sm:$0xf]
        %v332 = vld [vmem:[#allocation4 + $0x30] sm:$0xf]
        %v333 = vld [vmem:[#allocation4 + $0x34] sm:$0xf]
        %v334 = vld [vmem:[#allocation4 + $0x38] sm:$0xf]
        %v335 = vld [vmem:[#allocation4 + $0x3c] sm:$0xf]
        %v336 = vld [vmem:[#allocation4 + $0x40] sm:$0xf]
        %v337 = vld [vmem:[#allocation4 + $0x44] sm:$0xf]
        %v338 = vld [vmem:[#allocation4 + $0x48] sm:$0xf]
        %v339 = vld [vmem:[#allocation4 + $0x4c] sm:$0xf]
        %v340 = vld [vmem:[#allocation4 + $0x50] sm:$0xf]
        %v341 = vld [vmem:[#allocation4 + $0x54] sm:$0xf]
        %v342 = vld [vmem:[#allocation4 + $0x58] sm:$0xf]
        %v343 = vld [vmem:[#allocation4 + $0x5c] sm:$0xf]
        %v344 = vld [vmem:[#allocation4 + $0x60] sm:$0xf]
        %v345 = vld [vmem:[#allocation4 + $0x64] sm:$0xf]
        %v346 = vld [vmem:[#allocation4 + $0x68] sm:$0xf]
        %v347 = vld [vmem:[#allocation4 + $0x6c] sm:$0xf]
        %v348 = vld [vmem:[#allocation4 + $0x70] sm:$0xf]
        %v349 = vld [vmem:[#allocation4 + $0x74] sm:$0xf]
        %v350 = vld [vmem:[#allocation4 + $0x78] sm:$0xf]
        %v351 = vld [vmem:[#allocation4 + $0x7c] sm:$0xf]
        %v352 = vld [vmem:[#allocation4 + $0x80] sm:$0xf]
        %v353 = vld [vmem:[#allocation4 + $0x84] sm:$0xf]
        %v354 = vld [vmem:[#allocation4 + $0x88] sm:$0xf]
        %v355 = vld [vmem:[#allocation4 + $0x8c] sm:$0xf]
        %v356 = vld [vmem:[#allocation4 + $0x90] sm:$0xf]
        %v357 = vld [vmem:[#allocation4 + $0x94] sm:$0xf]
        %v358 = vld [vmem:[#allocation4 + $0x98] sm:$0xf]
        %v359 = vld [vmem:[#allocation4 + $0x9c] sm:$0xf]
        %v360 = vld [vmem:[#allocation4 + $0xa0] sm:$0xf]
        %v361 = vld [vmem:[#allocation4 + $0xa4] sm:$0xf]
        %v362 = vld [vmem:[#allocation4 + $0xa8] sm:$0xf]
        %v363 = vld [vmem:[#allocation4 + $0xac] sm:$0xf]
        %v364 = vld [vmem:[#allocation4 + $0xb0] sm:$0xf]
        %v365 = vld [vmem:[#allocation4 + $0xb4] sm:$0xf]
        %v366 = vld [vmem:[#allocation4 + $0xb8] sm:$0xf]
        %v367 = vld [vmem:[#allocation4 + $0xbc] sm:$0xf]
        %v368 = vld [vmem:[#allocation4 + $0xc0] sm:$0xf]
        %v369 = vld [vmem:[#allocation4 + $0xc4] sm:$0xf]
        %v370 = vld [vmem:[#allocation4 + $0xc8] sm:$0xf]
        %v371 = vld [vmem:[#allocation4 + $0xcc] sm:$0xf]
        %v372 = vld [vmem:[#allocation4 + $0xd0] sm:$0xf]
        %v373 = vld [vmem:[#allocation4 + $0xd4] sm:$0xf]
        %v374 = vld [vmem:[#allocation4 + $0xd8] sm:$0xf]
        %v375 = vld [vmem:[#allocation4 + $0xdc] sm:$0xf]
        %v376 = vld [vmem:[#allocation4 + $0xe0] sm:$0xf]
        %v377 = vld [vmem:[#allocation4 + $0xe4] sm:$0xf]
        %v378 = vld [vmem:[#allocation4 + $0xe8] sm:$0xf]
        %v379 = vld [vmem:[#allocation4 + $0xec] sm:$0xf]
        %v380 = vld [vmem:[#allocation4 + $0xf0] sm:$0xf]
        %v381 = vld [vmem:[#allocation4 + $0xf4] sm:$0xf]
        %v382 = vld [vmem:[#allocation4 + $0xf8] sm:$0xf]
        %v383 = vld [vmem:[#allocation4 + $0xfc] sm:$0xf]
        %v384 = vld [vmem:[#allocation4 + $0x100] sm:$0xf]
        %v385 = vld [vmem:[#allocation4 + $0x104] sm:$0xf]
        %v386 = vld [vmem:[#allocation4 + $0x108] sm:$0xf]
        %v387 = vld [vmem:[#allocation4 + $0x10c] sm:$0xf]
        %v388 = vld [vmem:[#allocation4 + $0x110] sm:$0xf]
        %v389 = vld [vmem:[#allocation4 + $0x114] sm:$0xf]
        %v390 = vld [vmem:[#allocation4 + $0x118] sm:$0xf]
        %v391 = vld [vmem:[#allocation4 + $0x11c] sm:$0xf]
        %v392 = vld [vmem:[#allocation4 + $0x120] sm:$0xf]
        %v393 = vld [vmem:[#allocation4 + $0x124] sm:$0xf]
        %v394 = vld [vmem:[#allocation4 + $0x128] sm:$0xf]
        %v395 = vld [vmem:[#allocation4 + $0x12c] sm:$0xf]
        %v396 = vld [vmem:[#allocation4 + $0x130] sm:$0xf]
        %v397 = vld [vmem:[#allocation4 + $0x134] sm:$0xf]
        %v398 = vld [vmem:[#allocation4 + $0x138] sm:$0xf]
        %v399 = vld [vmem:[#allocation4 + $0x13c] sm:$0xf]
        %v400 = vld [vmem:[#allocation4 + $0x140] sm:$0xf]
        %v401 = vld [vmem:[#allocation4 + $0x144] sm:$0xf]
        %v402 = vld [vmem:[#allocation4 + $0x148] sm:$0xf]
        %v403 = vld [vmem:[#allocation4 + $0x14c] sm:$0xf]
        %v404 = vld [vmem:[#allocation4 + $0x150] sm:$0xf]
        %v405 = vld [vmem:[#allocation4 + $0x154] sm:$0xf]
        %v406 = vld [vmem:[#allocation4 + $0x158] sm:$0xf]
        %v407 = vld [vmem:[#allocation4 + $0x15c] sm:$0xf]
        %v408 = vld [vmem:[#allocation4 + $0x160] sm:$0xf]
        %v409 = vld [vmem:[#allocation4 + $0x164] sm:$0xf]
        %v410 = vld [vmem:[#allocation4 + $0x168] sm:$0xf]
        %v411 = vld [vmem:[#allocation4 + $0x16c] sm:$0xf]
        %v412 = vld [vmem:[#allocation4 + $0x170] sm:$0xf]
        %v413 = vld [vmem:[#allocation4 + $0x174] sm:$0xf]
        %v414 = vld [vmem:[#allocation4 + $0x178] sm:$0xf]
        %v415 = vld [vmem:[#allocation4 + $0x17c] sm:$0xf]
        %v416 = vld [vmem:[#allocation4 + $0x180] sm:$0xf]
        %v417 = vld [vmem:[#allocation4 + $0x184] sm:$0xf]
        %v418 = vld [vmem:[%s2] sm:$0x1]
        %v420 = vlaneseq
        %v421 = vshrl.u32 %v420, 7
        %v422 = vsub.s32 0, %v421
        %v423 = vrot.slane %v418, %v422
        %v523 = vunpack.c.l.b16 %v320
        %v524 = vunpack.c.l.b16 %v321
        %v525 = vunpack.c.l.b16 %v322
        %v526 = vunpack.c.l.b16 %v323
        %v527 = vunpack.c.l.b16 %v324
        %v528 = vunpack.c.l.b16 %v325
        %v529 = vunpack.c.l.b16 %v326
        %v530 = vunpack.c.l.b16 %v327
        %v531 = vunpack.c.l.b16 %v328
        %v532 = vunpack.c.l.b16 %v329
        %v533 = vunpack.c.l.b16 %v330
        %v534 = vunpack.c.l.b16 %v331
        %v535 = vunpack.c.l.b16 %v332
        %v536 = vunpack.c.l.b16 %v333
        %v537 = vunpack.c.l.b16 %v334
        %v538 = vunpack.c.l.b16 %v335
        %v539 = vunpack.c.l.b16 %v336
        %v540 = vunpack.c.l.b16 %v337
        %v541 = vunpack.c.l.b16 %v338
        %v542 = vunpack.c.l.b16 %v339
        %v543 = vunpack.c.l.b16 %v340
        %v544 = vunpack.c.l.b16 %v341
        %v545 = vunpack.c.l.b16 %v342
        %v546 = vunpack.c.l.b16 %v343
        %v547 = vunpack.c.l.b16 %v344
        %v548 = vunpack.c.l.b16 %v345
        %v549 = vunpack.c.l.b16 %v346
        %v550 = vunpack.c.l.b16 %v347
        %v551 = vunpack.c.l.b16 %v348
        %v552 = vunpack.c.l.b16 %v349
        %v553 = vunpack.c.l.b16 %v350
        %v554 = vunpack.c.l.b16 %v351
        %v555 = vunpack.c.l.b16 %v352
        %v556 = vunpack.c.l.b16 %v353
        %v557 = vunpack.c.l.b16 %v354
        %v558 = vunpack.c.l.b16 %v355
        %v559 = vunpack.c.l.b16 %v356
        %v560 = vunpack.c.l.b16 %v357
        %v561 = vunpack.c.l.b16 %v358
        %v562 = vunpack.c.l.b16 %v359
        %v563 = vunpack.c.l.b16 %v360
        %v564 = vunpack.c.l.b16 %v361
        %v565 = vunpack.c.l.b16 %v362
        %v566 = vunpack.c.l.b16 %v363
        %v567 = vunpack.c.l.b16 %v364
        %v568 = vunpack.c.l.b16 %v365
        %v569 = vunpack.c.l.b16 %v366
        %v570 = vunpack.c.l.b16 %v367
        %v571 = vunpack.c.l.b16 %v368
        %v572 = vunpack.c.l.b16 %v369
        %v573 = vunpack.c.l.b16 %v370
        %v574 = vunpack.c.l.b16 %v371
        %v575 = vunpack.c.l.b16 %v372
        %v576 = vunpack.c.l.b16 %v373
        %v577 = vunpack.c.l.b16 %v374
        %v578 = vunpack.c.l.b16 %v375
        %v579 = vunpack.c.l.b16 %v376
        %v580 = vunpack.c.l.b16 %v377
        %v581 = vunpack.c.l.b16 %v378
        %v582 = vunpack.c.l.b16 %v379
        %v583 = vunpack.c.l.b16 %v380
        %v584 = vunpack.c.l.b16 %v381
        %v585 = vunpack.c.l.b16 %v382
        %v586 = vunpack.c.l.b16 %v383
        %v587 = vunpack.c.l.b16 %v384
        %v588 = vunpack.c.l.b16 %v385
        %v589 = vunpack.c.l.b16 %v386
        %v590 = vunpack.c.l.b16 %v387
        %v591 = vunpack.c.l.b16 %v388
        %v592 = vunpack.c.l.b16 %v389
        %v593 = vunpack.c.l.b16 %v390
        %v594 = vunpack.c.l.b16 %v391
        %v595 = vunpack.c.l.b16 %v392
        %v596 = vunpack.c.l.b16 %v393
        %v597 = vunpack.c.l.b16 %v394
        %v598 = vunpack.c.l.b16 %v395
        %v599 = vunpack.c.l.b16 %v396
        %v600 = vunpack.c.l.b16 %v397
        %v601 = vunpack.c.l.b16 %v398
        %v602 = vunpack.c.l.b16 %v399
        %v603 = vunpack.c.l.b16 %v400
        %v604 = vunpack.c.l.b16 %v401
        %v605 = vunpack.c.l.b16 %v402
        %v606 = vunpack.c.l.b16 %v403
        %v607 = vunpack.c.l.b16 %v404
        %v608 = vunpack.c.l.b16 %v405
        %v609 = vunpack.c.l.b16 %v406
        %v610 = vunpack.c.l.b16 %v407
        %v611 = vunpack.c.l.b16 %v408
        %v612 = vunpack.c.l.b16 %v409
        %v613 = vunpack.c.l.b16 %v410
        %v614 = vunpack.c.l.b16 %v411
        %v615 = vunpack.c.l.b16 %v412
        %v616 = vunpack.c.l.b16 %v413
        %v617 = vunpack.c.l.b16 %v414
        %v618 = vunpack.c.l.b16 %v415
        %v619 = vunpack.c.l.b16 %v416
        %v620 = vunpack.c.l.b16 %v417
        %v621 = vpack.c.b16 %v524, %v523
        %v622 = vpack.c.b16 %v526, %v525
        %v623 = vpack.c.b16 %v528, %v527
        %v624 = vpack.c.b16 %v530, %v529
        %v625 = vpack.c.b16 %v532, %v531
        %v626 = vpack.c.b16 %v534, %v533
        %v627 = vpack.c.b16 %v536, %v535
        %v628 = vpack.c.b16 %v538, %v537
        %v629 = vpack.c.b16 %v540, %v539
        %v630 = vpack.c.b16 %v542, %v541
        %v631 = vpack.c.b16 %v544, %v543
        %v632 = vpack.c.b16 %v546, %v545
        %v633 = vpack.c.b16 %v548, %v547
        %v634 = vpack.c.b16 %v550, %v549
        %v635 = vpack.c.b16 %v552, %v551
        %v636 = vpack.c.b16 %v554, %v553
        %v637 = vpack.c.b16 %v556, %v555
        %v638 = vpack.c.b16 %v558, %v557
        %v639 = vpack.c.b16 %v560, %v559
        %v640 = vpack.c.b16 %v562, %v561
        %v641 = vpack.c.b16 %v564, %v563
        %v642 = vpack.c.b16 %v566, %v565
        %v643 = vpack.c.b16 %v568, %v567
        %v644 = vpack.c.b16 %v570, %v569
        %v645 = vpack.c.b16 %v572, %v571
        %v646 = vpack.c.b16 %v574, %v573
        %v647 = vpack.c.b16 %v576, %v575
        %v648 = vpack.c.b16 %v578, %v577
        %v649 = vpack.c.b16 %v580, %v579
        %v650 = vpack.c.b16 %v582, %v581
        %v651 = vpack.c.b16 %v584, %v583
        %v652 = vpack.c.b16 %v586, %v585
        %v653 = vpack.c.b16 %v588, %v587
        %v654 = vpack.c.b16 %v590, %v589
        %v655 = vpack.c.b16 %v592, %v591
        %v656 = vpack.c.b16 %v594, %v593
        %v657 = vpack.c.b16 %v596, %v595
        %v658 = vpack.c.b16 %v598, %v597
        %v659 = vpack.c.b16 %v600, %v599
        %v660 = vpack.c.b16 %v602, %v601
        %v661 = vpack.c.b16 %v604, %v603
        %v662 = vpack.c.b16 %v606, %v605
        %v663 = vpack.c.b16 %v608, %v607
        %v664 = vpack.c.b16 %v610, %v609
        %v665 = vpack.c.b16 %v612, %v611
        %v666 = vpack.c.b16 %v614, %v613
        %v667 = vpack.c.b16 %v616, %v615
        %v668 = vpack.c.b16 %v618, %v617
        %v669 = vpack.c.b16 %v620, %v619
        %vm719 = vcmask 130048
        %v721 = vsel %vm719, %v312, 0
        %v724 = vsel %vm719, %v319, 0
        %726 = vmatprep.subr.bf16.mxu0 0
        %727 = vmatpush1.bf16.msra.mxu0 %v628
        %728 = vmatprep.subr.bf16.mxu0 0
        %729 = vmatpush1.bf16.msra.mxu0 %v627
        %730 = vmatprep.subr.bf16.mxu0 0
        %731 = vmatpush1.bf16.msra.mxu0 %v626
        %732 = vmatprep.subr.bf16.mxu0 0
        %733 = vmatpush1.bf16.msra.mxu0 %v625
        %734 = vmatprep.subr.bf16.mxu0 0
        %735 = vmatpush1.bf16.msra.mxu0 %v624
        %736 = vmatprep.subr.bf16.mxu0 0
        %737 = vmatpush1.bf16.msra.mxu0 %v623
        %738 = vmatprep.subr.bf16.mxu0 0
        %739 = vmatpush1.bf16.msra.mxu0 %v622
        %740 = vmatprep.subr.bf16.mxu0 0
        %741 = vmatpush1.bf16.msra.mxu0 %v621
        %742 = vmatprep.subr.bf16.mxu0 0
        %743 = vmatpush2.bf16.msra.mxu0 %v636
        %744 = vmatprep.subr.bf16.mxu0 0
        %745 = vmatpush2.bf16.msra.mxu0 %v635
        %746 = vmatprep.subr.bf16.mxu0 0
        %747 = vmatpush2.bf16.msra.mxu0 %v634
        %748 = vmatprep.subr.bf16.mxu0 0
        %749 = vmatpush2.bf16.msra.mxu0 %v633
        %750 = vmatprep.subr.bf16.mxu0 0
        %751 = vmatpush2.bf16.msra.mxu0 %v632
        %752 = vmatprep.subr.bf16.mxu0 0
        %753 = vmatpush2.bf16.msra.mxu0 %v631
        %754 = vmatprep.subr.bf16.mxu0 0
        %755 = vmatpush2.bf16.msra.mxu0 %v630
        %756 = vmatprep.subr.bf16.mxu0 0
        %757 = vmatpush2.bf16.msra.mxu0 %v629
        %758 = vmatprep.mubr.bf16.mxu0 %v307
        %759 = vmatmul.mubr.bf16.gmra.mxu0 %v306
        %v760 = vpop.f32.mrf.mxu0
        %v761 = vadd.f32 %v423, %v760
        %v762 = vpop.f32.mrf.mxu0
        %v763 = vpop.f32.mrf.mxu0
        %v764 = vadd.f32 %v423, %v763
        %v765 = vpop.f32.mrf.mxu0
        %766 = vmatprep.mubr.bf16.mxu0 %v314
        %767 = vmatmul.mubr.bf16.gmra.mxu0 %v313
        %v768 = vpop.f32.mrf.mxu0
        %v769 = vadd.f32 %v423, %v768
        %v770 = vpop.f32.mrf.mxu0
        %v771 = vpop.f32.mrf.mxu0
        %v772 = vadd.f32 %v423, %v771
        %v773 = vpop.f32.mrf.mxu0
        %774 = vdwg.mxu0
        %775 = vmatprep.subr.bf16.mxu0 0
        %776 = vmatpush1.bf16.msra.mxu0 %v644
        %777 = vmatprep.subr.bf16.mxu0 0
        %778 = vmatpush1.bf16.msra.mxu0 %v643
        %779 = vmatprep.subr.bf16.mxu0 0
        %780 = vmatpush1.bf16.msra.mxu0 %v642
        %781 = vmatprep.subr.bf16.mxu0 0
        %782 = vmatpush1.bf16.msra.mxu0 %v641
        %783 = vmatprep.subr.bf16.mxu0 0
        %784 = vmatpush1.bf16.msra.mxu0 %v640
        %785 = vmatprep.subr.bf16.mxu0 0
        %786 = vmatpush1.bf16.msra.mxu0 %v639
        %787 = vmatprep.subr.bf16.mxu0 0
        %788 = vmatpush1.bf16.msra.mxu0 %v638
        %789 = vmatprep.subr.bf16.mxu0 0
        %790 = vmatpush1.bf16.msra.mxu0 %v637
        %791 = vmatprep.subr.bf16.mxu0 0
        %792 = vmatpush2.bf16.msra.mxu0 %v652
        %793 = vmatprep.subr.bf16.mxu0 0
        %794 = vmatpush2.bf16.msra.mxu0 %v651
        %795 = vmatprep.subr.bf16.mxu0 0
        %796 = vmatpush2.bf16.msra.mxu0 %v650
        %797 = vmatprep.subr.bf16.mxu0 0
        %798 = vmatpush2.bf16.msra.mxu0 %v649
        %799 = vmatprep.subr.bf16.mxu0 0
        %800 = vmatpush2.bf16.msra.mxu0 %v648
        %801 = vmatprep.subr.bf16.mxu0 0
        %802 = vmatpush2.bf16.msra.mxu0 %v647
        %803 = vmatprep.subr.bf16.mxu0 0
        %804 = vmatpush2.bf16.msra.mxu0 %v646
        %805 = vmatprep.subr.bf16.mxu0 0
        %806 = vmatpush2.bf16.msra.mxu0 %v645
        %807 = vmatprep.mubr.bf16.mxu0 %v309
        %808 = vmatmul.mubr.bf16.gmra.mxu0 %v308
        %v809 = vpop.f32.mrf.mxu0
        %v810 = vadd.f32 %v761, %v809
        %v811 = vpop.f32.mrf.mxu0
        %v812 = vpop.f32.mrf.mxu0
        %v813 = vadd.f32 %v764, %v812
        %v814 = vpop.f32.mrf.mxu0
        %815 = vmatprep.mubr.bf16.mxu0 %v316
        %816 = vmatmul.mubr.bf16.gmra.mxu0 %v315
        %v817 = vpop.f32.mrf.mxu0
        %v818 = vadd.f32 %v769, %v817
        %v819 = vpop.f32.mrf.mxu0
        %v820 = vpop.f32.mrf.mxu0
        %v821 = vadd.f32 %v772, %v820
        %v822 = vpop.f32.mrf.mxu0
        %823 = vdwg.mxu0
        %824 = vmatprep.subr.bf16.mxu0 0
        %825 = vmatpush1.bf16.msra.mxu0 %v660
        %826 = vmatprep.subr.bf16.mxu0 0
        %827 = vmatpush1.bf16.msra.mxu0 %v659
        %828 = vmatprep.subr.bf16.mxu0 0
        %829 = vmatpush1.bf16.msra.mxu0 %v658
        %830 = vmatprep.subr.bf16.mxu0 0
        %831 = vmatpush1.bf16.msra.mxu0 %v657
        %832 = vmatprep.subr.bf16.mxu0 0
        %833 = vmatpush1.bf16.msra.mxu0 %v656
        %834 = vmatprep.subr.bf16.mxu0 0
        %835 = vmatpush1.bf16.msra.mxu0 %v655
        %836 = vmatprep.subr.bf16.mxu0 0
        %837 = vmatpush1.bf16.msra.mxu0 %v654
        %838 = vmatprep.subr.bf16.mxu0 0
        %839 = vmatpush1.bf16.msra.mxu0 %v653
        %840 = vmatprep.subr.bf16.mxu0 0
        %841 = vmatpush2.bf16.msra.mxu0 %v668
        %842 = vmatprep.subr.bf16.mxu0 0
        %843 = vmatpush2.bf16.msra.mxu0 %v667
        %844 = vmatprep.subr.bf16.mxu0 0
        %845 = vmatpush2.bf16.msra.mxu0 %v666
        %846 = vmatprep.subr.bf16.mxu0 0
        %847 = vmatpush2.bf16.msra.mxu0 %v665
        %848 = vmatprep.subr.bf16.mxu0 0
        %849 = vmatpush2.bf16.msra.mxu0 %v664
        %850 = vmatprep.subr.bf16.mxu0 0
        %851 = vmatpush2.bf16.msra.mxu0 %v663
        %852 = vmatprep.subr.bf16.mxu0 0
        %853 = vmatpush2.bf16.msra.mxu0 %v662
        %854 = vmatprep.subr.bf16.mxu0 0
        %855 = vmatpush2.bf16.msra.mxu0 %v661
        %856 = vmatprep.mubr.bf16.mxu0 %v311
        %857 = vmatmul.mubr.bf16.gmra.mxu0 %v310
        %v858 = vpop.f32.mrf.mxu0
        %v859 = vadd.f32 %v810, %v858
        %v860 = vpop.f32.mrf.mxu0
        %v861 = vpop.f32.mrf.mxu0
        %v862 = vadd.f32 %v813, %v861
        %v863 = vpop.f32.mrf.mxu0
        %864 = vmatprep.mubr.bf16.mxu0 %v318
        %865 = vmatmul.mubr.bf16.gmra.mxu0 %v317
        %v866 = vpop.f32.mrf.mxu0
        %v867 = vadd.f32 %v818, %v866
        %v868 = vpop.f32.mrf.mxu0
        %v869 = vpop.f32.mrf.mxu0
        %v870 = vadd.f32 %v821, %v869
        %v871 = vpop.f32.mrf.mxu0
        %872 = vdwg.mxu0
        %873 = vmatprep.subr.bf16.mxu0 0
        %874 = vmatpush1.bf16.msra.mxu0 0
        %875 = vmatprep.subr.bf16.mxu0 0
        %876 = vmatpush1.bf16.msra.mxu0 0
        %877 = vmatprep.subr.bf16.mxu0 0
        %878 = vmatpush1.bf16.msra.mxu0 0
        %879 = vmatprep.subr.bf16.mxu0 0
        %880 = vmatpush1.bf16.msra.mxu0 0
        %881 = vmatprep.subr.bf16.mxu0 0
        %882 = vmatpush1.bf16.msra.mxu0 0
        %883 = vmatprep.subr.bf16.mxu0 0
        %884 = vmatpush1.bf16.msra.mxu0 0
        %885 = vmatprep.subr.bf16.mxu0 0
        %886 = vmatpush1.bf16.msra.mxu0 0
        %887 = vmatprep.subr.bf16.mxu0 0
        %888 = vmatpush1.bf16.msra.mxu0 %v669
        %889 = vmatprep.subr.bf16.mxu0 0
        %890 = vmatpush2.bf16.msra.mxu0 0
        %891 = vmatprep.subr.bf16.mxu0 0
        %892 = vmatpush2.bf16.msra.mxu0 0
        %893 = vmatprep.subr.bf16.mxu0 0
        %894 = vmatpush2.bf16.msra.mxu0 0
        %895 = vmatprep.subr.bf16.mxu0 0
        %896 = vmatpush2.bf16.msra.mxu0 0
        %897 = vmatprep.subr.bf16.mxu0 0
        %898 = vmatpush2.bf16.msra.mxu0 0
        %899 = vmatprep.subr.bf16.mxu0 0
        %900 = vmatpush2.bf16.msra.mxu0 0
        %901 = vmatprep.subr.bf16.mxu0 0
        %902 = vmatpush2.bf16.msra.mxu0 0
        %903 = vmatprep.subr.bf16.mxu0 0
        %904 = vmatpush2.bf16.msra.mxu0 0
        %905 = vmatprep.mubr.bf16.mxu0 0
        %906 = vmatmul.mubr.bf16.gmra.mxu0 %v721
        %v907 = vpop.f32.mrf.mxu0
        %v908 = vadd.f32 %v859, %v907
        %v909 = vpop.f32.mrf.mxu0
        %v910 = vpop.f32.mrf.mxu0
        %v911 = vadd.f32 %v862, %v910
        %v912 = vpop.f32.mrf.mxu0
        %913 = vmatprep.mubr.bf16.mxu0 0
        %914 = vmatmul.mubr.bf16.gmra.mxu0 %v724
        %v915 = vpop.f32.mrf.mxu0
        %v916 = vadd.f32 %v867, %v915
        %v917 = vpop.f32.mrf.mxu0
        %v918 = vpop.f32.mrf.mxu0
        %v919 = vadd.f32 %v870, %v918
        %v920 = vpop.f32.mrf.mxu0
        %921 = vdwg.mxu0
        %v922 = vmax.f32 %v908, 0.0
        %v923 = vmax.f32 %v911, 0.0
        %v924 = vmax.f32 %v916, 0.0
        %v925 = vmax.f32 %v919, 0.0
        %v926 = vpack.c.bf16 %v923, %v922
        %v927 = vpack.c.bf16 %v925, %v924
        %v928 = vld [vmem:[#allocation6] sm:$0xf]
        %v929 = vld [vmem:[#allocation6 + $0x4] sm:$0xf]
        %v930 = vld [vmem:[#allocation6 + $0x8] sm:$0xf]
        %v931 = vld [vmem:[#allocation6 + $0xc] sm:$0xf]
        %v932 = vld [vmem:[#allocation6 + $0x10] sm:$0xf]
        %v933 = vld [vmem:[#allocation6 + $0x14] sm:$0xf]
        %v934 = vld [vmem:[#allocation6 + $0x18] sm:$0xf]
        %v935 = vld [vmem:[#allocation6 + $0x1c] sm:$0xf]
        %v936 = vld [vmem:[#allocation6 + $0x20] sm:$0xf]
        %v937 = vld [vmem:[#allocation6 + $0x24] sm:$0xf]
        %v938 = vld [vmem:[#allocation6 + $0x28] sm:$0xf]
        %v939 = vld [vmem:[#allocation6 + $0x2c] sm:$0xf]
        %v940 = vld [vmem:[#allocation6 + $0x30] sm:$0xf]
        %v941 = vld [vmem:[#allocation6 + $0x34] sm:$0xf]
        %v942 = vld [vmem:[#allocation6 + $0x38] sm:$0xf]
        %v943 = vld [vmem:[#allocation6 + $0x3c] sm:$0xf]
        %v944 = vld [vmem:[%s4] sm:$0x1]
        %v946 = vlaneseq
        %v947 = vshrl.u32 %v946, 7
        %v948 = vsub.s32 0, %v947
        %v949 = vrot.slane %v944, %v948
        %v967 = vunpack.c.l.b16 %v928
        %v968 = vunpack.c.l.b16 %v929
        %v969 = vunpack.c.l.b16 %v930
        %v970 = vunpack.c.l.b16 %v931
        %v971 = vunpack.c.l.b16 %v932
        %v972 = vunpack.c.l.b16 %v933
        %v973 = vunpack.c.l.b16 %v934
        %v974 = vunpack.c.l.b16 %v935
        %v975 = vunpack.c.l.b16 %v936
        %v976 = vunpack.c.l.b16 %v937
        %v977 = vunpack.c.l.b16 %v938
        %v978 = vunpack.c.l.b16 %v939
        %v979 = vunpack.c.l.b16 %v940
        %v980 = vunpack.c.l.b16 %v941
        %v981 = vunpack.c.l.b16 %v942
        %v982 = vunpack.c.l.b16 %v943
        %v983 = vpack.c.b16 %v968, %v967
        %v984 = vpack.c.b16 %v970, %v969
        %v985 = vpack.c.b16 %v972, %v971
        %v986 = vpack.c.b16 %v974, %v973
        %v987 = vpack.c.b16 %v976, %v975
        %v988 = vpack.c.b16 %v978, %v977
        %v989 = vpack.c.b16 %v980, %v979
        %v990 = vpack.c.b16 %v982, %v981
        %999 = vmatprep.subr.bf16.mxu0 0
        %1000 = vmatpush1.bf16.msra.mxu0 %v990
        %1001 = vmatprep.subr.bf16.mxu0 0
        %1002 = vmatpush1.bf16.msra.mxu0 %v989
        %1003 = vmatprep.subr.bf16.mxu0 0
        %1004 = vmatpush1.bf16.msra.mxu0 %v988
        %1005 = vmatprep.subr.bf16.mxu0 0
        %1006 = vmatpush1.bf16.msra.mxu0 %v987
        %1007 = vmatprep.subr.bf16.mxu0 0
        %1008 = vmatpush1.bf16.msra.mxu0 %v986
        %1009 = vmatprep.subr.bf16.mxu0 0
        %1010 = vmatpush1.bf16.msra.mxu0 %v985
        %1011 = vmatprep.subr.bf16.mxu0 0
        %1012 = vmatpush1.bf16.msra.mxu0 %v984
        %1013 = vmatprep.subr.bf16.mxu0 0
        %1014 = vmatpush1.bf16.msra.mxu0 %v983
        %1015 = vmatprep.subr.bf16.mxu0 0
        %1016 = vmatpush2.bf16.msra.mxu0 0
        %1017 = vmatprep.subr.bf16.mxu0 0
        %1018 = vmatpush2.bf16.msra.mxu0 0
        %1019 = vmatprep.subr.bf16.mxu0 0
        %1020 = vmatpush2.bf16.msra.mxu0 0
        %1021 = vmatprep.subr.bf16.mxu0 0
        %1022 = vmatpush2.bf16.msra.mxu0 0
        %1023 = vmatprep.subr.bf16.mxu0 0
        %1024 = vmatpush2.bf16.msra.mxu0 0
        %1025 = vmatprep.subr.bf16.mxu0 0
        %1026 = vmatpush2.bf16.msra.mxu0 0
        %1027 = vmatprep.subr.bf16.mxu0 0
        %1028 = vmatpush2.bf16.msra.mxu0 0
        %1029 = vmatprep.subr.bf16.mxu0 0
        %1030 = vmatpush2.bf16.msra.mxu0 0
        %1031 = vmatprep.mubr.bf16.mxu0 0
        %1032 = vmatmul.mubr.bf16.gmra.mxu0 %v926
        %v1033 = vpop.f32.mrf.mxu0
        %v1034 = vadd.f32 %v949, %v1033
        %v1035 = vpop.f32.mrf.mxu0
        %v1036 = vpop.f32.mrf.mxu0
        %v1037 = vadd.f32 %v949, %v1036
        %v1038 = vpop.f32.mrf.mxu0
        %1039 = vmatprep.mubr.bf16.mxu0 0
        %1040 = vmatmul.mubr.bf16.gmra.mxu0 %v927
        %v1041 = vpop.f32.mrf.mxu0
        %v1042 = vadd.f32 %v949, %v1041
        %v1043 = vpop.f32.mrf.mxu0
        %v1044 = vpop.f32.mrf.mxu0
        %v1045 = vadd.f32 %v949, %v1044
        %v1046 = vpop.f32.mrf.mxu0
        %1047 = vdwg.mxu0
        %v1048 = vpack.c.bf16 %v1037, %v1034
        %v1049 = vpack.c.bf16 %v1045, %v1042
        %v1052 = vunpack.c.l.b16 %v1048
        %v1053 = vunpack.c.h.b16 %v1048
        %v1054 = vunpack.c.l.b16 %v1049
        %v1055 = vunpack.c.h.b16 %v1049
        %v1056 = vpack.c.b16 %v1052, %v1052
        %v1057 = vpack.c.b16 %v1053, %v1053
        %v1058 = vpack.c.b16 %v1054, %v1054
        %v1059 = vpack.c.b16 %v1055, %v1055
        %1064 = vst [vmem:[%s275] sm:$0xf] %v1056
        %1065 = vst [vmem:[%s275 + $0x4] sm:$0xf] %v1057
        %1066 = vst [vmem:[%s275 + $0x8] sm:$0xf] %v1058
        %1067 = vst [vmem:[%s275 + $0xc] sm:$0xf] %v1059
        %s1068 = smul.u32 4, %s20
        %p1069 = scmp.lt.s32.totalorder %s1068, 7
        %s1070 = scalar_select %p1069, %s1068, 7
        %s1071 = smul.addr %s1070, 4
        %s1072 = scalar_lea.vmem %s5, %s1071
        // Predicated region
        $region53: #{nn_forward.1} parent=39 // pred_check
          %p1073 = pneg %p148
        $region54: #{nn_forward.1} parent=39 // pred_check_branch
          %1075 = sbr.rel (%p1073) target = $region56
        $region55: #{nn_forward.1} parent=39 // pred_region
          %s1076 = smul.u32 4, %s20
        $region56: #{nn_forward.1} parent=39 // pred_fallthru
          _
      $region40: #{nn_forward.1} parent=5 // pred_fallthru
        _
      %p1077 = scmp.le.s32.totalorder 2, %s15
      // Predicated region
      $region57: #{nn_forward.1} parent=5 // pred_check
        %p1078 = pneg %p1077
      $region58: #{nn_forward.1} parent=5 // pred_check_branch
        %1080 = sbr.rel (%p1078) target = $region60
      $region59: #{nn_forward.1} parent=5 // pred_region
        %s1081 = ssub.s32 %s15, 2
        // Predicated region
        $region61: #{nn_forward.1} parent=59 // pred_check
          %p1082 = pneg %p154
        $region62: #{nn_forward.1} parent=59 // pred_check_branch
          %1084 = sbr.rel (%p1082) target = $region64
        $region63: #{nn_forward.1} parent=59 // pred_region
          %s1085 = smul.u32 4, %s21
          %p1086 = scmp.lt.s32.totalorder %s1085, 7
          %s1087 = scalar_select %p1086, %s1085, 7
          %s1088 = smul.addr %s1087, 4
          %s1089 = scalar_lea.vmem %s5, %s1088
        $region64: #{nn_forward.1} parent=59 // pred_fallthru
          _
      $region60: #{nn_forward.1} parent=5 // pred_fallthru
        _
    $region6: #{nn_forward.1} parent=1 // loop_footer
      %s19 = sadd.s32 1, %s15
    $region7: #{nn_forward.1} parent=1 // loop_footer_branch
      %14 = sbr.rel target = $region3
    $region8: #{nn_forward.1} parent=1 // loop_exit
      _
    %1090 = vsyncpa [#allocation3], 1
    %s1091 = scalar_lea.sflag [#allocation3], 1
    %1092 = vsyncpa %s1091, 1
    %1093 = vsyncpa [#allocation5], 1

</llo_original>
